<compile_context>
chip_gen: v7x
topology: tpu7x:2x2x1
jax: 0.10.0
libtpu: 0.0.40
codegen_flags: <defaults>
</compile_context>

<pallas_src>
import jax
import jax.numpy as jnp
from jax.experimental import pallas as pl
from jax.experimental.pallas import tpu as pltpu


def _round_up(x, m):
    return ((x + m - 1) // m) * m


# ----------------------------------------------------------------------------
# Kernel 1: fused EMA update over ALL parameters in one pallas_call
#   ema = alpha * ema + (1 - alpha) * model
# ----------------------------------------------------------------------------
EMA_LANES = 1024          # lane-dense columns (multiple of 128)
EMA_MAX_BLOCK_ROWS = 256  # (256, 1024) f32 = 1 MiB per buffer per block


def _ema_fused_kernel(alpha_ref, ema_ref, model_ref, out_ref):
    a = alpha_ref[0]                       # f32 scalar from SMEM
    out_ref[...] = a * ema_ref[...] + (1.0 - a) * model_ref[...]


def _fused_ema_update(ema_params, model_params, alpha):
    """Single gridded, lane-dense, input/output-aliased Pallas call for every leaf."""
    e_leaves, treedef = jax.tree_util.tree_flatten(ema_params)
    m_leaves, _ = jax.tree_util.tree_flatten(model_params)
    shapes = [l.shape for l in e_leaves]
    sizes = [l.size for l in e_leaves]
    dtypes = [l.dtype for l in e_leaves]

    # Keep EMA math in f32 (bf16 state would drop the (1-alpha)*delta term).
    e_flat = jnp.concatenate([jnp.ravel(l).astype(jnp.float32) for l in e_leaves])
    m_flat = jnp.concatenate([jnp.ravel(l).astype(jnp.float32) for l in m_leaves])
    n = e_flat.shape[0]

    rows = pl.cdiv(n, EMA_LANES)
    block_rows = min(EMA_MAX_BLOCK_ROWS, _round_up(rows, 8))
    rows_p = _round_up(rows, block_rows)
    n_pad = rows_p * EMA_LANES

    e2 = jnp.pad(e_flat, (0, n_pad - n)).reshape(rows_p, EMA_LANES)
    m2 = jnp.pad(m_flat, (0, n_pad - n)).reshape(rows_p, EMA_LANES)
    alpha_arr = jnp.asarray(alpha, jnp.float32).reshape(1)

    out = pl.pallas_call(
        _ema_fused_kernel,
        out_shape=jax.ShapeDtypeStruct((rows_p, EMA_LANES), jnp.float32),
        grid=(rows_p // block_rows,),
        in_specs=[
            pl.BlockSpec(memory_space=pltpu.MemorySpace.SMEM),      # alpha scalar
            pl.BlockSpec((block_rows, EMA_LANES), lambda i: (i, 0)),  # ema tile
            pl.BlockSpec((block_rows, EMA_LANES), lambda i: (i, 0)),  # model tile
        ],
        out_specs=pl.BlockSpec((block_rows, EMA_LANES), lambda i: (i, 0)),
        input_output_aliases={1: 0},   # update ema slab in place (no fresh HBM buffer)
        compiler_params=pltpu.CompilerParams(
            dimension_semantics=("parallel",)),
    )(alpha_arr, e2, m2)

    # Split the flat slab back into leaves (all inside the same jitted executable).
    new_flat = out.reshape(-1)
    new_leaves = []
    off = 0
    for shp, sz, dt in zip(shapes, sizes, dtypes):
        new_leaves.append(new_flat[off:off + sz].reshape(shp).astype(dt))
        off += sz
    return jax.tree_util.tree_unflatten(treedef, new_leaves)


# ----------------------------------------------------------------------------
# Kernel 2: inner-module forward  y = GELU(x @ W1 + b1) @ W2 + b2
#   - batch-tiled grid (parallel -> megacore), weights resident across tiles
#   - bf16 MXU operands, f32 accumulation
# ----------------------------------------------------------------------------
def _mlp_forward_kernel(x_ref, w1_ref, b1_ref, w2_ref, b2_ref, o_ref):
    x = x_ref[...].astype(jnp.bfloat16)
    w1 = w1_ref[...].astype(jnp.bfloat16)
    h = jnp.dot(x, w1, preferred_element_type=jnp.float32) + b1_ref[...]
    h = jax.nn.gelu(h)
    w2 = w2_ref[...].astype(jnp.bfloat16)
    y = jnp.dot(h.astype(jnp.bfloat16), w2, preferred_element_type=jnp.float32) + b2_ref[...]
    o_ref[...] = y.astype(o_ref.dtype)


def mlp_forward(params, x, *, block_b=128):
    # TODO(synk): for large H (>~2048) add K/N tiling of W1/W2 so a single weight
    # block fits the v7x 64 MiB VMEM / v5e 16 MiB default scoped limit.
    w1, b1, w2, b2 = params["w1"], params["b1"], params["w2"], params["b2"]
    b1r = b1.reshape(1, -1).astype(jnp.float32)
    b2r = b2.reshape(1, -1).astype(jnp.float32)
    B, H = x.shape

    tb = min(block_b, _round_up(B, 8))
    b_pad = _round_up(B, tb)
    xp = jnp.pad(x, ((0, b_pad - B), (0, 0))) if b_pad != B else x

    cost = pl.CostEstimate(
        flops=2 * 2 * b_pad * H * H,                 # two matmuls
        transcendentals=b_pad * H,                   # gelu
        bytes_accessed=(2 * b_pad * H + w1.size + w2.size + b1.size + b2.size) * 4,
    )

    out = pl.pallas_call(
        _mlp_forward_kernel,
        out_shape=jax.ShapeDtypeStruct((b_pad, H), x.dtype),
        grid=(b_pad // tb,),
        in_specs=[
            pl.BlockSpec((tb, H), lambda i: (i, 0)),     # x: batch tile
            pl.BlockSpec(w1.shape, lambda i: (0, 0)),    # W1: resident across grid
            pl.BlockSpec(b1r.shape, lambda i: (0, 0)),
            pl.BlockSpec(w2.shape, lambda i: (0, 0)),    # W2: resident across grid
            pl.BlockSpec(b2r.shape, lambda i: (0, 0)),
        ],
        out_specs=pl.BlockSpec((tb, H), lambda i: (i, 0)),
        compiler_params=pltpu.CompilerParams(
            dimension_semantics=("parallel",)),
        cost_estimate=cost,
    )(xp, w1, b1r, w2, b2r)
    return out[:B]


# ----------------------------------------------------------------------------
# EmaModel: JAX/Pallas equivalent of the PyTorch module
# ----------------------------------------------------------------------------
class EmaModel:
    def __init__(self, model_params, alpha=0.9999):
        # deepcopy(model) -> copy of the parameter pytree; eval() is implicit
        # (the inner MLP has no dropout / batchnorm buffers).
        self.params = jax.tree_util.tree_map(jnp.asarray, model_params)
        self.alpha = jnp.float32(alpha)
        # One jitted executable each; the EMA update is a single fused pallas_call.
        self._update_fn = jax.jit(_fused_ema_update)
        self._forward_fn = jax.jit(mlp_forward)

    def update(self, model_params):
        # ema_v <- alpha * ema_v + (1 - alpha) * model_v   (all leaves, one kernel)
        self.params = self._update_fn(self.params, model_params, self.alpha)

    def set(self, model_params):
        # ema_v <- model_v  (pure copy; no hot-path compute)
        self.params = jax.tree_util.tree_map(jnp.asarray, model_params)

    def __call__(self, x):
        return self._forward_fn(self.params, x)


# ----------------------------------------------------------------------------
# Deterministic setup + correctness check
# ----------------------------------------------------------------------------
def init_mlp_params(key, hidden):
    k1, k2, k3, k4 = jax.random.split(key, 4)
    scale = 1.0 / jnp.sqrt(hidden)
    return {
        "w1": jax.random.normal(k1, (hidden, hidden), jnp.float32) * scale,
        "b1": jax.random.normal(k2, (hidden,), jnp.float32) * 0.01,
        "w2": jax.random.normal(k3, (hidden, hidden), jnp.float32) * scale,
        "b2": jax.random.normal(k4, (hidden,), jnp.float32) * 0.01,
    }


def ref_forward(params, x):
    # Same math as the kernel: bf16 MXU operands, f32 accumulation.
    w1 = params["w1"].astype(jnp.bfloat16)
    w2 = params["w2"].astype(jnp.bfloat16)
    h = jnp.dot(x.astype(jnp.bfloat16), w1, preferred_element_type=jnp.float32) + params["b1"]
    h = jax.nn.gelu(h)
    return jnp.dot(h.astype(jnp.bfloat16), w2, preferred_element_type=jnp.float32) + params["b2"]


if __name__ == "__main__":
    key = jax.random.PRNGKey(0)
    batch, hidden = 256, 128   # small but lane-dense (H multiple of 128)
    alpha = 0.9999

    k_model, k_delta, k_x = jax.random.split(key, 3)
    model_params = init_mlp_params(k_model, hidden)

    # EmaModel(model): deep-copies the model's parameters.
    ema = EmaModel(model_params, alpha=alpha)

    # Simulate one "training step": perturb the live model, then ema.update(model).
    delta_keys = dict(zip(model_params.keys(),
                          jax.random.split(k_delta, len(model_params))))
    live_params = jax.tree_util.tree_map(
        lambda p, k: p + 0.05 * jax.random.normal(k, p.shape, p.dtype),
        model_params, delta_keys)
    ema.update(live_params)

    # Forward pass through the EMA copy.
    x = jax.random.normal(k_x, (batch, hidden), jnp.float32)
    y = jax.block_until_ready(ema(x))

    # Reference: plain-JAX EMA update (same f32 arithmetic) + forward.
    a32 = jnp.float32(alpha)
    ref_params = jax.tree_util.tree_map(
        lambda e, m: a32 * e + (jnp.float32(1.0) - a32) * m, model_params, live_params)
    for name in model_params:
        assert jnp.allclose(ema.params[name], ref_params[name],
                            atol=1e-6, rtol=1e-6), f"EMA mismatch on {name}"

    y_ref = ref_forward(ref_params, x)
    assert jnp.allclose(y, y_ref, atol=2e-2, rtol=2e-2), "forward mismatch"

    print("KERNEL_OK")
</pallas_src>

<mosaic_0001>
module attributes {stable_mosaic.version = 11 : i64} {
  func.func @_ema_fused_kernel(%arg0: i32, %arg1: memref<1xf32, #tpu.memory_space<smem>>, %arg2: memref<40x1024xf32, #tpu.memory_space<vmem>>, %arg3: memref<40x1024xf32, #tpu.memory_space<vmem>>, %arg4: memref<40x1024xf32, #tpu.memory_space<vmem>>) attributes {dimension_semantics = [#tpu.dimension_semantics<parallel>], iteration_bounds = array<i64: 1>, scalar_prefetch = 0 : i64, scratch_operands = 0 : i64, tpu.core_type = #tpu.core_type<tc>, window_params = [{transform_indices = @transform_0, window_bounds = array<i64: 1>}, {transform_indices = @transform_1, window_bounds = array<i64: 40, 1024>}, {transform_indices = @transform_2, window_bounds = array<i64: 40, 1024>}, {transform_indices = @transform_3, window_bounds = array<i64: 40, 1024>}]} {
    %c0 = arith.constant 0 : index
    %0 = memref.load %arg1[%c0] : memref<1xf32, #tpu.memory_space<smem>>
    %c0_0 = arith.constant 0 : index
    %c0_1 = arith.constant 0 : index
    %1 = vector.load %arg2[%c0_0, %c0_1] : memref<40x1024xf32, #tpu.memory_space<vmem>>, vector<40x1024xf32>
    %2 = vector.broadcast %0 : f32 to vector<40x1024xf32>
    %3 = arith.mulf %2, %1 : vector<40x1024xf32>
    %cst = arith.constant 1.000000e+00 : f32
    %4 = arith.subf %cst, %0 : f32
    %c0_2 = arith.constant 0 : index
    %c0_3 = arith.constant 0 : index
    %5 = vector.load %arg3[%c0_2, %c0_3] : memref<40x1024xf32, #tpu.memory_space<vmem>>, vector<40x1024xf32>
    %6 = vector.broadcast %4 : f32 to vector<40x1024xf32>
    %7 = arith.mulf %6, %5 : vector<40x1024xf32>
    %8 = arith.addf %3, %7 : vector<40x1024xf32>
    %c0_4 = arith.constant 0 : index
    %c0_5 = arith.constant 0 : index
    %9 = vector.load %arg4[%c0_4, %c0_5] : memref<40x1024xf32, #tpu.memory_space<vmem>>, vector<40x1024xf32>
    tpu.vector_store %arg4[%c0_4, %c0_5], %8 {strides = array<i32>} : memref<40x1024xf32, #tpu.memory_space<vmem>>, vector<40x1024xf32>,
    return
  }
  func.func @transform_0(%arg0: i32) -> i32 {
    %c0_i32 = arith.constant 0 : i32
    %c0_i32_0 = arith.constant 0 : i32
    return %c0_i32 : i32
  }
  func.func @transform_1(%arg0: i32) -> (i32, i32) {
    %c0_i32 = arith.constant 0 : i32
    %c0_i32_0 = arith.constant 0 : i32
    return %arg0, %c0_i32 : i32, i32
  }
  func.func @transform_2(%arg0: i32) -> (i32, i32) {
    %c0_i32 = arith.constant 0 : i32
    %c0_i32_0 = arith.constant 0 : i32
    return %arg0, %c0_i32 : i32, i32
  }
  func.func @transform_3(%arg0: i32) -> (i32, i32) {
    %c0_i32 = arith.constant 0 : i32
    %c0_i32_0 = arith.constant 0 : i32
    return %arg0, %c0_i32 : i32, i32
  }
}

</mosaic_0001>

<llo_original>
// kernel: _fused_ema_update.1
$region0: #{_fused_ema_update.1}
  #allocation0 [shape = 'u32[]', space=smem, size = 0x4, offset = 0x4, fixed_abs, tag = 'smem constant byte address 0x4 - core index']
  #allocation1 [shape = 'u32[144,128]{1,0:T(1,128)}', space=vmem, size = 0x12000, scoped, tag = 'internal scratch']
  #allocation2 [shape = 'f32[1]{0:T(128)S(6)}', space=smem, size = 0x200, scoped, tag = 'scoped memory for _fused_ema_update.1']
  %s0 = inlined_call_operand.<no memory space> [shape: f32[1], index: 0, kind: input, shape index: {}]
  %s1 = inlined_call_operand.vmem [shape: f32[40,1024], index: 1, kind: input, shape index: {}, may-alias: {1,3}]
  %s2 = inlined_call_operand.vmem [shape: f32[40,1024], index: 2, kind: input, shape index: {}]
  %s3 = inlined_call_operand.vmem [shape: f32[40,1024], index: 3, kind: output, shape index: {}, may-alias: {1,3}]
  %s4 = sld [smem:[#allocation0]]
  $region22: #{_fused_ema_update.1} parent=0
    _
  %s6 = ssub.s32 1, %s4
  %s7 = scalar_select 0, %s6, %s4
  %8 = sst [smem:[#allocation2]] %s0
  // Predicated region
  $region2: #{_fused_ema_update.1} parent=0 // pred_check
    _
  $region3: #{_fused_ema_update.1} parent=0 // pred_check_branch
    %10 = sbr.rel (0) target = $region5
  $region4: #{_fused_ema_update.1} parent=0 // pred_region
    _
  $region5: #{_fused_ema_update.1} parent=0 // pred_fallthru
    _
  // Predicated region
  $region6: #{_fused_ema_update.1} parent=0 // pred_check
    _
  $region7: #{_fused_ema_update.1} parent=0 // pred_check_branch
    %12 = sbr.rel (0) target = $region9
  $region8: #{_fused_ema_update.1} parent=0 // pred_region
    _
  $region9: #{_fused_ema_update.1} parent=0 // pred_fallthru
    _
  // Predicated region
  $region10: #{_fused_ema_update.1} parent=0 // pred_check
    _
  $region11: #{_fused_ema_update.1} parent=0 // pred_check_branch
    %14 = sbr.rel (0) target = $region13
  $region12: #{_fused_ema_update.1} parent=0 // pred_region
    _
  $region13: #{_fused_ema_update.1} parent=0 // pred_fallthru
    _
  %s15 = sld [smem:[#allocation2]]
  %v16 = vld [vmem:[%s1] sm:$0xff]
  %v17 = vld [vmem:[%s1 + $0x8] sm:$0xff]
  %v18 = vld [vmem:[%s1 + $0x10] sm:$0xff]
  %v19 = vld [vmem:[%s1 + $0x18] sm:$0xff]
  %v20 = vld [vmem:[%s1 + $0x20] sm:$0xff]
  %v21 = vld [vmem:[%s1 + $0x28] sm:$0xff]
  %v22 = vld [vmem:[%s1 + $0x30] sm:$0xff]
  %v23 = vld [vmem:[%s1 + $0x38] sm:$0xff]
  %v24 = vld [vmem:[%s1 + $0x40] sm:$0xff]
  %v25 = vld [vmem:[%s1 + $0x48] sm:$0xff]
  %v26 = vld [vmem:[%s1 + $0x50] sm:$0xff]
  %v27 = vld [vmem:[%s1 + $0x58] sm:$0xff]
  %v28 = vld [vmem:[%s1 + $0x60] sm:$0xff]
  %v29 = vld [vmem:[%s1 + $0x68] sm:$0xff]
  %v30 = vld [vmem:[%s1 + $0x70] sm:$0xff]
  %v31 = vld [vmem:[%s1 + $0x78] sm:$0xff]
  %v32 = vld [vmem:[%s1 + $0x80] sm:$0xff]
  %v33 = vld [vmem:[%s1 + $0x88] sm:$0xff]
  %v34 = vld [vmem:[%s1 + $0x90] sm:$0xff]
  %v35 = vld [vmem:[%s1 + $0x98] sm:$0xff]
  %v36 = vld [vmem:[%s1 + $0xa0] sm:$0xff]
  %v37 = vld [vmem:[%s1 + $0xa8] sm:$0xff]
  %v38 = vld [vmem:[%s1 + $0xb0] sm:$0xff]
  %v39 = vld [vmem:[%s1 + $0xb8] sm:$0xff]
  %v40 = vld [vmem:[%s1 + $0xc0] sm:$0xff]
  %v41 = vld [vmem:[%s1 + $0xc8] sm:$0xff]
  %v42 = vld [vmem:[%s1 + $0xd0] sm:$0xff]
  %v43 = vld [vmem:[%s1 + $0xd8] sm:$0xff]
  %v44 = vld [vmem:[%s1 + $0xe0] sm:$0xff]
  %v45 = vld [vmem:[%s1 + $0xe8] sm:$0xff]
  %v46 = vld [vmem:[%s1 + $0xf0] sm:$0xff]
  %v47 = vld [vmem:[%s1 + $0xf8] sm:$0xff]
  %v48 = vld [vmem:[%s1 + $0x100] sm:$0xff]
  %v49 = vld [vmem:[%s1 + $0x108] sm:$0xff]
  %v50 = vld [vmem:[%s1 + $0x110] sm:$0xff]
  %v51 = vld [vmem:[%s1 + $0x118] sm:$0xff]
  %v52 = vld [vmem:[%s1 + $0x120] sm:$0xff]
  %v53 = vld [vmem:[%s1 + $0x128] sm:$0xff]
  %v54 = vld [vmem:[%s1 + $0x130] sm:$0xff]
  %v55 = vld [vmem:[%s1 + $0x138] sm:$0xff]
  %v56 = vstv %s15
  %v57 = vmul.f32 %v56, %v16
  %v58 = vmul.f32 %v56, %v17
  %v59 = vmul.f32 %v56, %v18
  %v60 = vmul.f32 %v56, %v19
  %v61 = vmul.f32 %v56, %v20
  %v62 = vmul.f32 %v56, %v21
  %v63 = vmul.f32 %v56, %v22
  %v64 = vmul.f32 %v56, %v23
  %v65 = vmul.f32 %v56, %v24
  %v66 = vmul.f32 %v56, %v25
  %v67 = vmul.f32 %v56, %v26
  %v68 = vmul.f32 %v56, %v27
  %v69 = vmul.f32 %v56, %v28
  %v70 = vmul.f32 %v56, %v29
  %v71 = vmul.f32 %v56, %v30
  %v72 = vmul.f32 %v56, %v31
  %v73 = vmul.f32 %v56, %v32
  %v74 = vmul.f32 %v56, %v33
  %v75 = vmul.f32 %v56, %v34
  %v76 = vmul.f32 %v56, %v35
  %v77 = vmul.f32 %v56, %v36
  %v78 = vmul.f32 %v56, %v37
  %v79 = vmul.f32 %v56, %v38
  %v80 = vmul.f32 %v56, %v39
  %v81 = vmul.f32 %v56, %v40
  %v82 = vmul.f32 %v56, %v41
  %v83 = vmul.f32 %v56, %v42
  %v84 = vmul.f32 %v56, %v43
  %v85 = vmul.f32 %v56, %v44
  %v86 = vmul.f32 %v56, %v45
  %v87 = vmul.f32 %v56, %v46
  %v88 = vmul.f32 %v56, %v47
  %v89 = vmul.f32 %v56, %v48
  %v90 = vmul.f32 %v56, %v49
  %v91 = vmul.f32 %v56, %v50
  %v92 = vmul.f32 %v56, %v51
  %v93 = vmul.f32 %v56, %v52
  %v94 = vmul.f32 %v56, %v53
  %v95 = vmul.f32 %v56, %v54
  %v96 = vmul.f32 %v56, %v55
  %s97 = ssub.f32 1.0, %s15
  %v98 = vld [vmem:[%s2] sm:$0xff]
  %v99 = vld [vmem:[%s2 + $0x8] sm:$0xff]
  %v100 = vld [vmem:[%s2 + $0x10] sm:$0xff]
  %v101 = vld [vmem:[%s2 + $0x18] sm:$0xff]
  %v102 = vld [vmem:[%s2 + $0x20] sm:$0xff]
  %v103 = vld [vmem:[%s2 + $0x28] sm:$0xff]
  %v104 = vld [vmem:[%s2 + $0x30] sm:$0xff]
  %v105 = vld [vmem:[%s2 + $0x38] sm:$0xff]
  %v106 = vld [vmem:[%s2 + $0x40] sm:$0xff]
  %v107 = vld [vmem:[%s2 + $0x48] sm:$0xff]
  %v108 = vld [vmem:[%s2 + $0x50] sm:$0xff]
  %v109 = vld [vmem:[%s2 + $0x58] sm:$0xff]
  %v110 = vld [vmem:[%s2 + $0x60] sm:$0xff]
  %v111 = vld [vmem:[%s2 + $0x68] sm:$0xff]
  %v112 = vld [vmem:[%s2 + $0x70] sm:$0xff]
  %v113 = vld [vmem:[%s2 + $0x78] sm:$0xff]
  %v114 = vld [vmem:[%s2 + $0x80] sm:$0xff]
  %v115 = vld [vmem:[%s2 + $0x88] sm:$0xff]
  %v116 = vld [vmem:[%s2 + $0x90] sm:$0xff]
  %v117 = vld [vmem:[%s2 + $0x98] sm:$0xff]
  %v118 = vld [vmem:[%s2 + $0xa0] sm:$0xff]
  %v119 = vld [vmem:[%s2 + $0xa8] sm:$0xff]
  %v120 = vld [vmem:[%s2 + $0xb0] sm:$0xff]
  %v121 = vld [vmem:[%s2 + $0xb8] sm:$0xff]
  %v122 = vld [vmem:[%s2 + $0xc0] sm:$0xff]
  %v123 = vld [vmem:[%s2 + $0xc8] sm:$0xff]
  %v124 = vld [vmem:[%s2 + $0xd0] sm:$0xff]
  %v125 = vld [vmem:[%s2 + $0xd8] sm:$0xff]
  %v126 = vld [vmem:[%s2 + $0xe0] sm:$0xff]
  %v127 = vld [vmem:[%s2 + $0xe8] sm:$0xff]
  %v128 = vld [vmem:[%s2 + $0xf0] sm:$0xff]
  %v129 = vld [vmem:[%s2 + $0xf8] sm:$0xff]
  %v130 = vld [vmem:[%s2 + $0x100] sm:$0xff]
  %v131 = vld [vmem:[%s2 + $0x108] sm:$0xff]
  %v132 = vld [vmem:[%s2 + $0x110] sm:$0xff]
  %v133 = vld [vmem:[%s2 + $0x118] sm:$0xff]
  %v134 = vld [vmem:[%s2 + $0x120] sm:$0xff]
  %v135 = vld [vmem:[%s2 + $0x128] sm:$0xff]
  %v136 = vld [vmem:[%s2 + $0x130] sm:$0xff]
  %v137 = vld [vmem:[%s2 + $0x138] sm:$0xff]
  %v138 = vstv %s97
  %v139 = vmul.f32 %v138, %v98
  %v140 = vmul.f32 %v138, %v99
  %v141 = vmul.f32 %v138, %v100
  %v142 = vmul.f32 %v138, %v101
  %v143 = vmul.f32 %v138, %v102
  %v144 = vmul.f32 %v138, %v103
  %v145 = vmul.f32 %v138, %v104
  %v146 = vmul.f32 %v138, %v105
  %v147 = vmul.f32 %v138, %v106
  %v148 = vmul.f32 %v138, %v107
  %v149 = vmul.f32 %v138, %v108
  %v150 = vmul.f32 %v138, %v109
  %v151 = vmul.f32 %v138, %v110
  %v152 = vmul.f32 %v138, %v111
  %v153 = vmul.f32 %v138, %v112
  %v154 = vmul.f32 %v138, %v113
  %v155 = vmul.f32 %v138, %v114
  %v156 = vmul.f32 %v138, %v115
  %v157 = vmul.f32 %v138, %v116
  %v158 = vmul.f32 %v138, %v117
  %v159 = vmul.f32 %v138, %v118
  %v160 = vmul.f32 %v138, %v119
  %v161 = vmul.f32 %v138, %v120
  %v162 = vmul.f32 %v138, %v121
  %v163 = vmul.f32 %v138, %v122
  %v164 = vmul.f32 %v138, %v123
  %v165 = vmul.f32 %v138, %v124
  %v166 = vmul.f32 %v138, %v125
  %v167 = vmul.f32 %v138, %v126
  %v168 = vmul.f32 %v138, %v127
  %v169 = vmul.f32 %v138, %v128
  %v170 = vmul.f32 %v138, %v129
  %v171 = vmul.f32 %v138, %v130
  %v172 = vmul.f32 %v138, %v131
  %v173 = vmul.f32 %v138, %v132
  %v174 = vmul.f32 %v138, %v133
  %v175 = vmul.f32 %v138, %v134
  %v176 = vmul.f32 %v138, %v135
  %v177 = vmul.f32 %v138, %v136
  %v178 = vmul.f32 %v138, %v137
  %v179 = vadd.f32 %v57, %v139
  %v180 = vadd.f32 %v58, %v140
  %v181 = vadd.f32 %v59, %v141
  %v182 = vadd.f32 %v60, %v142
  %v183 = vadd.f32 %v61, %v143
  %v184 = vadd.f32 %v62, %v144
  %v185 = vadd.f32 %v63, %v145
  %v186 = vadd.f32 %v64, %v146
  %v187 = vadd.f32 %v65, %v147
  %v188 = vadd.f32 %v66, %v148
  %v189 = vadd.f32 %v67, %v149
  %v190 = vadd.f32 %v68, %v150
  %v191 = vadd.f32 %v69, %v151
  %v192 = vadd.f32 %v70, %v152
  %v193 = vadd.f32 %v71, %v153
  %v194 = vadd.f32 %v72, %v154
  %v195 = vadd.f32 %v73, %v155
  %v196 = vadd.f32 %v74, %v156
  %v197 = vadd.f32 %v75, %v157
  %v198 = vadd.f32 %v76, %v158
  %v199 = vadd.f32 %v77, %v159
  %v200 = vadd.f32 %v78, %v160
  %v201 = vadd.f32 %v79, %v161
  %v202 = vadd.f32 %v80, %v162
  %v203 = vadd.f32 %v81, %v163
  %v204 = vadd.f32 %v82, %v164
  %v205 = vadd.f32 %v83, %v165
  %v206 = vadd.f32 %v84, %v166
  %v207 = vadd.f32 %v85, %v167
  %v208 = vadd.f32 %v86, %v168
  %v209 = vadd.f32 %v87, %v169
  %v210 = vadd.f32 %v88, %v170
  %v211 = vadd.f32 %v89, %v171
  %v212 = vadd.f32 %v90, %v172
  %v213 = vadd.f32 %v91, %v173
  %v214 = vadd.f32 %v92, %v174
  %v215 = vadd.f32 %v93, %v175
  %v216 = vadd.f32 %v94, %v176
  %v217 = vadd.f32 %v95, %v177
  %v218 = vadd.f32 %v96, %v178
  %219 = vst [vmem:[%s3] sm:$0xff] %v179
  %220 = vst [vmem:[%s3 + $0x8] sm:$0xff] %v180
  %221 = vst [vmem:[%s3 + $0x10] sm:$0xff] %v181
  %222 = vst [vmem:[%s3 + $0x18] sm:$0xff] %v182
  %223 = vst [vmem:[%s3 + $0x20] sm:$0xff] %v183
  %224 = vst [vmem:[%s3 + $0x28] sm:$0xff] %v184
  %225 = vst [vmem:[%s3 + $0x30] sm:$0xff] %v185
  %226 = vst [vmem:[%s3 + $0x38] sm:$0xff] %v186
  %227 = vst [vmem:[%s3 + $0x40] sm:$0xff] %v187
  %228 = vst [vmem:[%s3 + $0x48] sm:$0xff] %v188
  %229 = vst [vmem:[%s3 + $0x50] sm:$0xff] %v189
  %230 = vst [vmem:[%s3 + $0x58] sm:$0xff] %v190
  %231 = vst [vmem:[%s3 + $0x60] sm:$0xff] %v191
  %232 = vst [vmem:[%s3 + $0x68] sm:$0xff] %v192
  %233 = vst [vmem:[%s3 + $0x70] sm:$0xff] %v193
  %234 = vst [vmem:[%s3 + $0x78] sm:$0xff] %v194
  %235 = vst [vmem:[%s3 + $0x80] sm:$0xff] %v195
  %236 = vst [vmem:[%s3 + $0x88] sm:$0xff] %v196
  %237 = vst [vmem:[%s3 + $0x90] sm:$0xff] %v197
  %238 = vst [vmem:[%s3 + $0x98] sm:$0xff] %v198
  %239 = vst [vmem:[%s3 + $0xa0] sm:$0xff] %v199
  %240 = vst [vmem:[%s3 + $0xa8] sm:$0xff] %v200
  %241 = vst [vmem:[%s3 + $0xb0] sm:$0xff] %v201
  %242 = vst [vmem:[%s3 + $0xb8] sm:$0xff] %v202
  %243 = vst [vmem:[%s3 + $0xc0] sm:$0xff] %v203
  %244 = vst [vmem:[%s3 + $0xc8] sm:$0xff] %v204
  %245 = vst [vmem:[%s3 + $0xd0] sm:$0xff] %v205
  %246 = vst [vmem:[%s3 + $0xd8] sm:$0xff] %v206
  %247 = vst [vmem:[%s3 + $0xe0] sm:$0xff] %v207
  %248 = vst [vmem:[%s3 + $0xe8] sm:$0xff] %v208
  %249 = vst [vmem:[%s3 + $0xf0] sm:$0xff] %v209
  %250 = vst [vmem:[%s3 + $0xf8] sm:$0xff] %v210
  %251 = vst [vmem:[%s3 + $0x100] sm:$0xff] %v211
  %252 = vst [vmem:[%s3 + $0x108] sm:$0xff] %v212
  %253 = vst [vmem:[%s3 + $0x110] sm:$0xff] %v213
  %254 = vst [vmem:[%s3 + $0x118] sm:$0xff] %v214
  %255 = vst [vmem:[%s3 + $0x120] sm:$0xff] %v215
  %256 = vst [vmem:[%s3 + $0x128] sm:$0xff] %v216
  %257 = vst [vmem:[%s3 + $0x130] sm:$0xff] %v217
  %258 = vst [vmem:[%s3 + $0x138] sm:$0xff] %v218
  // Predicated region
  $region14: #{_fused_ema_update.1} parent=0 // pred_check
    _
  $region15: #{_fused_ema_update.1} parent=0 // pred_check_branch
    %260 = sbr.rel (0) target = $region17
  $region16: #{_fused_ema_update.1} parent=0 // pred_region
    _
  $region17: #{_fused_ema_update.1} parent=0 // pred_fallthru
    _
  // Predicated region
  $region18: #{_fused_ema_update.1} parent=0 // pred_check
    _
  $region19: #{_fused_ema_update.1} parent=0 // pred_check_branch
    %262 = sbr.rel (0) target = $region21
  $region20: #{_fused_ema_update.1} parent=0 // pred_region
    _
  $region21: #{_fused_ema_update.1} parent=0 // pred_fallthru
    _

</llo_original>
